<compile_context>
chip_gen: v6e
topology: v6e:2x2x1
jax: 0.10.0
libtpu: 0.0.40
codegen_flags: <defaults>
</compile_context>

<pallas_src>
import math

import jax
import jax.numpy as jnp
from jax.experimental import pallas as pl
from jax.experimental.pallas import tpu as pltpu


def _mlp_kernel(x_ref, p1_ref, p2_ref, o_ref):
    x = x_ref[...].astype(jnp.float32)              # (tile, pack*nin), lane-dense

    # Packed layer-1 params: rows [0:pack*nin] = block-diag W1, last row = tiled b1.
    kw1 = p1_ref.shape[0] - 1
    w1 = p1_ref[:kw1, :].astype(jnp.float32)        # (pack*nin, pack*2)
    b1 = p1_ref[kw1:, :].astype(jnp.float32)        # (1, pack*2)
    h = jnp.tanh(jnp.dot(x, w1, preferred_element_type=jnp.float32) + b1)

    # Packed layer-2 params: rows [0:pack*2] = block-diag W2, last row = tiled b2.
    kw2 = p2_ref.shape[0] - 1
    w2 = p2_ref[:kw2, :].astype(jnp.float32)        # (pack*2, pack*nout)
    b2 = p2_ref[kw2:, :].astype(jnp.float32)        # (1, pack*nout)
    y = jnp.dot(h, w2, preferred_element_type=jnp.float32) + b2   # (tile, pack*nout)

    # Store transposed -> lane-dense (pack*nout, tile) output block, unmasked vst.
    o_ref[...] = y.T.astype(o_ref.dtype)


def _round_up(a, b):
    return (a + b - 1) // b * b


def _pick_tile(rows, target):
    """Tile size in packed rows: multiple of 128; keep >=2 grid steps when possible."""
    tile = min(target, _round_up(rows, 128))
    if tile >= 256 and pl.cdiv(rows, tile) < 2:
        # Split so the 'parallel' batch axis can shard across v7x's 2 TensorCores.
        tile = max(128, _round_up(pl.cdiv(rows, 2), 128))
    return tile


def resnet_forward(x, w1, b1, w2, b2, *, target_tile=2048):
    """x: (B, nin); w1: (nin, 2); b1: (2,); w2: (2, nout); b2: (nout,) -> (B, nout)."""
    B, nin = x.shape
    nh = w1.shape[1]
    nout = w2.shape[1]
    dt = x.dtype

    # Pack `pack` consecutive batch rows into one 128-lane VMEM row.
    pack = 128 // nin if (0 < nin <= 128 and 128 % nin == 0) else 1
    pack = max(1, math.gcd(pack, B))

    R = B // pack              # packed rows
    kin = pack * nin           # lanes of the packed input (128 for nin=32)
    hh = pack * nh             # packed hidden width
    npk = pack * nout          # packed output width

    # Block-diagonal packed parameters with the bias folded in as the last row.
    eye = jnp.eye(pack, dtype=dt)
    p1 = jnp.concatenate(
        [jnp.kron(eye, w1.astype(dt)), jnp.tile(b1.astype(dt), pack)[None, :]], axis=0
    )                                                        # (kin + 1, hh)
    p2 = jnp.concatenate(
        [jnp.kron(eye, w2.astype(dt)), jnp.tile(b2.astype(dt), pack)[None, :]], axis=0
    )                                                        # (hh + 1, npk)

    x2 = x.reshape(R, kin)     # `pack` consecutive rows per VMEM row (lane-dense)

    tile = _pick_tile(R, target_tile)
    grid = (pl.cdiv(R, tile),)     # ragged last block instead of a jnp.pad HBM copy

    cost = pl.CostEstimate(
        flops=2 * B * nin * nh + 2 * B * nh * nout,
        transcendentals=B * nh,
        bytes_accessed=4 * (B * nin + B * nout + (nin + 1) * nh + (nh + 1) * nout),
    )

    out_t = pl.pallas_call(
        _mlp_kernel,
        out_shape=jax.ShapeDtypeStruct((npk, R), dt),
        grid=grid,
        in_specs=[
            pl.BlockSpec((tile, kin), lambda i: (i, 0)),       # streamed batch tiles
            pl.BlockSpec((kin + 1, hh), lambda i: (0, 0)),     # resident layer-1 params
            pl.BlockSpec((hh + 1, npk), lambda i: (0, 0)),     # resident layer-2 params
        ],
        out_specs=pl.BlockSpec((npk, tile), lambda i: (0, i)), # lane-dense output
        compiler_params=pltpu.CompilerParams(
            dimension_semantics=("parallel",),                 # megacore sharding on v7x
            vmem_limit_bytes=32 * 1024 * 1024,                 # safe on v7x's 64 MiB VMEM
        ),
        cost_estimate=cost,
    )(x2, p1, p2)

    # Only the tiny output gets transposed/reshaped back: (pack*nout, R) -> (B, nout).
    return out_t.T.reshape(B, nout)


if __name__ == "__main__":
    # Shapes consistent with the module: nin=32, hidden=2 (fixed), nout=4.
    # B=1024 -> 256 packed rows -> two 128-row tiles, exercising the multi-tile
    # pipelined path and the parallel batch axis.
    B, nin, nout = 1024, 32, 4
    key = jax.random.PRNGKey(0)
    kx, ka, kb, kc, kd = jax.random.split(key, 5)

    x = jax.random.normal(kx, (B, nin), dtype=jnp.float32)
    # Mimic torch Linear's uniform(-1/sqrt(fan_in), 1/sqrt(fan_in)) init.
    lim1 = 1.0 / float(nin) ** 0.5
    w1 = jax.random.uniform(ka, (nin, 2), jnp.float32, -lim1, lim1)
    b1 = jax.random.uniform(kb, (2,), jnp.float32, -lim1, lim1)
    lim2 = 1.0 / 2.0 ** 0.5
    w2 = jax.random.uniform(kc, (2, nout), jnp.float32, -lim2, lim2)
    b2 = jax.random.uniform(kd, (nout,), jnp.float32, -lim2, lim2)

    out = jax.block_until_ready(resnet_forward(x, w1, b1, w2, b2))

    # Pure-JAX reference for correctness.
    ref = jnp.tanh(x @ w1 + b1) @ w2 + b2
    assert out.shape == (B, nout)
    assert jnp.allclose(out, ref, atol=1e-4, rtol=1e-4), "mismatch vs reference"
    print("KERNEL_OK")
</pallas_src>

<mosaic_0001>
module attributes {stable_mosaic.version = 11 : i64} {
  func.func @_mlp_kernel(%arg0: i32, %arg1: memref<128x128xf32, #tpu.memory_space<vmem>>, %arg2: memref<129x8xf32, #tpu.memory_space<vmem>>, %arg3: memref<9x16xf32, #tpu.memory_space<vmem>>, %arg4: memref<16x128xf32, #tpu.memory_space<vmem>>) attributes {dimension_semantics = [#tpu.dimension_semantics<parallel>], iteration_bounds = array<i64: 2>, scalar_prefetch = 0 : i64, scratch_operands = 0 : i64, tpu.core_type = #tpu.core_type<tc>, window_params = [{transform_indices = @transform_0, window_bounds = array<i64: 128, 128>}, {pipeline_mode = #tpu.pipeline_mode<synchronous>, transform_indices = @transform_1, window_bounds = array<i64: 129, 8>}, {pipeline_mode = #tpu.pipeline_mode<synchronous>, transform_indices = @transform_2, window_bounds = array<i64: 9, 16>}, {transform_indices = @transform_3, window_bounds = array<i64: 16, 128>}]} {
    %c0 = arith.constant 0 : index
    %c0_0 = arith.constant 0 : index
    %0 = vector.load %arg1[%c0, %c0_0] : memref<128x128xf32, #tpu.memory_space<vmem>>, vector<128x128xf32>
    %c0_1 = arith.constant 0 : index
    %c0_2 = arith.constant 0 : index
    %1 = vector.load %arg2[%c0_1, %c0_2] : memref<129x8xf32, #tpu.memory_space<vmem>>, vector<128x8xf32>
    %c128 = arith.constant 128 : index
    %c0_3 = arith.constant 0 : index
    %2 = vector.load %arg2[%c128, %c0_3] : memref<129x8xf32, #tpu.memory_space<vmem>>, vector<1x8xf32>
    %cst = arith.constant dense<0.000000e+00> : vector<128x8xf32>
    %3 = tpu.matmul %0, %1, %cst {dimension_numbers = #tpu.dot_dimension_numbers<[1], [0], [0], [1], [0, 0, 1, 1], [], []>} : vector<128x128xf32>, vector<128x8xf32>, vector<128x8xf32> -> vector<128x8xf32>
    %4 = vector.broadcast %2 : vector<1x8xf32> to vector<128x8xf32>
    %5 = arith.addf %3, %4 : vector<128x8xf32>
    %6 = math.tanh %5 : vector<128x8xf32>
    %c0_4 = arith.constant 0 : index
    %c0_5 = arith.constant 0 : index
    %7 = vector.load %arg3[%c0_4, %c0_5] : memref<9x16xf32, #tpu.memory_space<vmem>>, vector<8x16xf32>
    %c8 = arith.constant 8 : index
    %c0_6 = arith.constant 0 : index
    %8 = vector.load %arg3[%c8, %c0_6] : memref<9x16xf32, #tpu.memory_space<vmem>>, vector<1x16xf32>
    %cst_7 = arith.constant dense<0.000000e+00> : vector<128x16xf32>
    %9 = tpu.matmul %6, %7, %cst_7 {dimension_numbers = #tpu.dot_dimension_numbers<[1], [0], [0], [1], [0, 0, 1, 1], [], []>} : vector<128x8xf32>, vector<8x16xf32>, vector<128x16xf32> -> vector<128x16xf32>
    %10 = vector.broadcast %8 : vector<1x16xf32> to vector<128x16xf32>
    %11 = arith.addf %9, %10 : vector<128x16xf32>
    %12 = tpu.transpose %11, [1, 0] : vector<128x16xf32> -> vector<16x128xf32>
    %c0_8 = arith.constant 0 : index
    %c0_9 = arith.constant 0 : index
    %13 = vector.load %arg4[%c0_8, %c0_9] : memref<16x128xf32, #tpu.memory_space<vmem>>, vector<16x128xf32>
    tpu.vector_store %arg4[%c0_8, %c0_9], %12 {strides = array<i32>} : memref<16x128xf32, #tpu.memory_space<vmem>>, vector<16x128xf32>,
    return
  }
  func.func @transform_0(%arg0: i32) -> (i32, i32) {
    %c0_i32 = arith.constant 0 : i32
    %c0_i32_0 = arith.constant 0 : i32
    return %arg0, %c0_i32 : i32, i32
  }
  func.func @transform_1(%arg0: i32) -> (i32, i32) {
    %c0_i32 = arith.constant 0 : i32
    %c0_i32_0 = arith.constant 0 : i32
    %c0_i32_1 = arith.constant 0 : i32
    return %c0_i32, %c0_i32_0 : i32, i32
  }
  func.func @transform_2(%arg0: i32) -> (i32, i32) {
    %c0_i32 = arith.constant 0 : i32
    %c0_i32_0 = arith.constant 0 : i32
    %c0_i32_1 = arith.constant 0 : i32
    return %c0_i32, %c0_i32_0 : i32, i32
  }
  func.func @transform_3(%arg0: i32) -> (i32, i32) {
    %c0_i32 = arith.constant 0 : i32
    %c0_i32_0 = arith.constant 0 : i32
    return %c0_i32, %arg0 : i32, i32
  }
}

</mosaic_0001>

<llo_original>
// kernel: tpu_custom_call.1
$region0: #{tpu_custom_call.1}
  #allocation0 [shape = 'u32[]', space=smem, size = 0x4, offset = 0x4, fixed_abs, tag = 'smem constant byte address 0x4 - core index']
  #allocation1 [shape = 'u32[144,128]{1,0:T(1,128)}', space=vmem, size = 0x12000, scoped, tag = 'internal scratch']
  %s0 = inlined_call_operand.hbm [shape: f32[256,128], index: 0, kind: input, shape index: {}]
  %s1 = inlined_call_operand.vmem [shape: f32[129,8], index: 1, kind: input, shape index: {}]
  %s2 = inlined_call_operand.vmem [shape: f32[9,16], index: 2, kind: input, shape index: {}]
  %s3 = inlined_call_operand.hbm [shape: f32[16,256], index: 3, kind: output, shape index: {}]
  %s4 = sld [smem:[#allocation0]]
  $region49: #{tpu_custom_call.1} parent=0
    _
  %s6 = ssub.s32 1, %s4
  %s7 = scalar_select 0, %s6, %s4
  $region1: #{tpu_custom_call.1} parent=0
    #allocation2 [shape = 'u8[131072]{0}', space=vmem, size = 0x20000, scoped, tag = 'input window, operand 0']
    #allocation3 [shape = 's32[2]{0}', space=sflag, size = 0x8, scoped, tag = 'scoped memory for tpu_custom_call.1']
    #allocation4 [shape = 's32[2]{0}', space=sflag, size = 0x8, scoped, tag = 'scoped memory for tpu_custom_call.1']
    #allocation5 [shape = 'u8[16384]{0}', space=vmem, size = 0x4000, scoped, tag = 'output window, operand 0']
    %8 = vsyncpa [#allocation3], 0
    %s9 = scalar_lea.sflag [#allocation3], 1
    %10 = vsyncpa %s9, 0
    %11 = vsyncpa [#allocation4], 0
    %s12 = scalar_lea.sflag [#allocation4], 1
    %13 = vsyncpa %s12, 0
    loop: start=0, step=1, limit=4
    $region2: #{tpu_custom_call.1} parent=1 // loop_pre_header
      _
    $region3: #{tpu_custom_call.1} parent=1 // loop_header
      %s15 = sphi 0, %s19
      %p16 = scmp.ge.s32.totalorder %s15, 4
      %s25 = sphi 0, %s27
      %s28 = sphi 0, %s25
      %s29 = sphi 0, %s28
      %s45 = sphi 0, %s29
      %s49 = sphi 0, %s49
      %s51 = sphi 0, %s49
      %s52 = sphi 0, %s51
      %s66 = sphi 0, %s52
      %s70 = sphi 0, %s70
      %s72 = sphi 0, %s70
      %s73 = sphi 0, %s72
      %s87 = sphi 0, %s73
      %s93 = sphi 0, %s95
      %s96 = sphi 0, %s93
      %s97 = sphi 0, %s96
      %s113 = sphi 0, %s97
    $region4: #{tpu_custom_call.1} parent=1 // loop_header_branch
      %18 = sbr.rel (%p16) target = $region8
    $region5: #{tpu_custom_call.1} parent=1 // loop_body
      %s20 = ssub.s32 %s15, 1
      %s21 = ssub.s32 %s15, 2
      %s22 = sadd.s32 %s15, 1
      %s23 = ssub.s32 %s15, %s22
      %p24 = scmp.eq.s32.totalorder %s23, 0
      %s26 = sadd.s32 %s25, 1
      %s27 = scalar_select %p24, %s25, %s26
      %p30 = pneg %p24
      %p31 = scmp.eq.s32.totalorder %s15, 1
      %p32 = por %p30, %p31
      %p33 = scmp.ne.s32.totalorder %s25, %s28
      %p34 = scmp.eq.s32.totalorder %s15, 0
      %p35 = por %p33, %p34
      %p36 = scmp.ne.s32.totalorder %s25, %s28
      %p37 = scmp.eq.s32.totalorder %s20, 1
      %p38 = por %p36, %p37
      %p39 = scmp.ne.s32.totalorder %s28, %s29
      %p40 = scmp.eq.s32.totalorder %s20, 0
      %p41 = por %p39, %p40
      %p42 = scmp.ne.s32.totalorder %s28, %s29
      %p43 = scmp.eq.s32.totalorder %s21, 1
      %p44 = por %p42, %p43
      %p46 = scmp.ne.s32.totalorder %s29, %s45
      %p47 = scmp.eq.s32.totalorder %s21, 0
      %p48 = por %p46, %p47
      %s50 = sadd.s32 %s49, 1
      %p53 = scmp.eq.s32.totalorder %s15, 1
      %p54 = scmp.ne.s32.totalorder %s49, %s51
      %p55 = scmp.eq.s32.totalorder %s15, 0
      %p56 = por %p54, %p55
      %p57 = scmp.ne.s32.totalorder %s49, %s51
      %p58 = scmp.eq.s32.totalorder %s20, 1
      %p59 = por %p57, %p58
      %p60 = scmp.ne.s32.totalorder %s51, %s52
      %p61 = scmp.eq.s32.totalorder %s20, 0
      %p62 = por %p60, %p61
      %p63 = scmp.ne.s32.totalorder %s51, %s52
      %p64 = scmp.eq.s32.totalorder %s21, 1
      %p65 = por %p63, %p64
      %p67 = scmp.ne.s32.totalorder %s52, %s66
      %p68 = scmp.eq.s32.totalorder %s21, 0
      %p69 = por %p67, %p68
      %s71 = sadd.s32 %s70, 1
      %p74 = scmp.eq.s32.totalorder %s15, 1
      %p75 = scmp.ne.s32.totalorder %s70, %s72
      %p76 = scmp.eq.s32.totalorder %s15, 0
      %p77 = por %p75, %p76
      %p78 = scmp.ne.s32.totalorder %s70, %s72
      %p79 = scmp.eq.s32.totalorder %s20, 1
      %p80 = por %p78, %p79
      %p81 = scmp.ne.s32.totalorder %s72, %s73
      %p82 = scmp.eq.s32.totalorder %s20, 0
      %p83 = por %p81, %p82
      %p84 = scmp.ne.s32.totalorder %s72, %s73
      %p85 = scmp.eq.s32.totalorder %s21, 1
      %p86 = por %p84, %p85
      %p88 = scmp.ne.s32.totalorder %s73, %s87
      %p89 = scmp.eq.s32.totalorder %s21, 0
      %p90 = por %p88, %p89
      %s91 = ssub.s32 %s15, %s22
      %p92 = scmp.eq.s32.totalorder %s91, 0
      %s94 = sadd.s32 %s93, 1
      %s95 = scalar_select %p92, %s93, %s94
      %p98 = pneg %p92
      %p99 = scmp.eq.s32.totalorder %s15, 1
      %p100 = por %p98, %p99
      %p101 = scmp.ne.s32.totalorder %s93, %s96
      %p102 = scmp.eq.s32.totalorder %s15, 0
      %p103 = por %p101, %p102
      %p104 = scmp.ne.s32.totalorder %s93, %s96
      %p105 = scmp.eq.s32.totalorder %s20, 1
      %p106 = por %p104, %p105
      %p107 = scmp.ne.s32.totalorder %s96, %s97
      %p108 = scmp.eq.s32.totalorder %s20, 0
      %p109 = por %p107, %p108
      %p110 = scmp.ne.s32.totalorder %s96, %s97
      %p111 = scmp.eq.s32.totalorder %s21, 1
      %p112 = por %p110, %p111
      %p114 = scmp.ne.s32.totalorder %s97, %s113
      %p115 = scmp.eq.s32.totalorder %s21, 0
      %p116 = por %p114, %p115
      %p117 = scmp.le.s32.totalorder 1, %s15
      %p118 = scmp.lt.s32.totalorder %s15, 3
      %p119 = pnand %p117, %p118
      %p120 = pneg %p119
      // Predicated region
      $region9: #{tpu_custom_call.1} parent=5 // pred_check
        _
      $region10: #{tpu_custom_call.1} parent=5 // pred_check_branch
        %122 = sbr.rel (%p119) target = $region12
      $region11: #{tpu_custom_call.1} parent=5 // pred_region
        %s123 = ssub.s32 %s15, 1
        // Predicated region
        $region13: #{tpu_custom_call.1} parent=11 // pred_check
          %p124 = pneg %p62
        $region14: #{tpu_custom_call.1} parent=11 // pred_check_branch
          %126 = sbr.rel (%p124) target = $region16
        $region15: #{tpu_custom_call.1} parent=11 // pred_region
          _
        $region16: #{tpu_custom_call.1} parent=11 // pred_fallthru
          _
        // Predicated region
        $region17: #{tpu_custom_call.1} parent=11 // pred_check
          %p127 = pneg %p83
        $region18: #{tpu_custom_call.1} parent=11 // pred_check_branch
          %129 = sbr.rel (%p127) target = $region20
        $region19: #{tpu_custom_call.1} parent=11 // pred_region
          _
        $region20: #{tpu_custom_call.1} parent=11 // pred_fallthru
          _
      $region12: #{tpu_custom_call.1} parent=5 // pred_fallthru
        _
      %p130 = scmp.lt.s32.totalorder %s15, 2
      // Predicated region
      $region21: #{tpu_custom_call.1} parent=5 // pred_check
        %p131 = pneg %p130
      $region22: #{tpu_custom_call.1} parent=5 // pred_check_branch
        %133 = sbr.rel (%p131) target = $region24
      $region23: #{tpu_custom_call.1} parent=5 // pred_region
        // Predicated region
        $region25: #{tpu_custom_call.1} parent=23 // pred_check
          %p134 = pneg %p35
        $region26: #{tpu_custom_call.1} parent=23 // pred_check_branch
          %136 = sbr.rel (%p134) target = $region28
        $region27: #{tpu_custom_call.1} parent=23 // pred_region
          %s137 = sand.u32 %s25, 1
          %s138 = scalar_lea.sflag [#allocation3], %s137
          %s139 = sand.u32 %s25, 1
          %s140 = smul.addr %s139, 128
          %s141 = scalar_lea.vmem [#allocation2], %s140
          %s142 = smul.u32 16, %s15
          %s144 = ssub.s32 2048, 2048
          %145 = vsyncadd %s138, %s144
          %s146 = smul.addr %s142, 128
          %s147 = scalar_lea.hbm %s0, %s146
          %s148 = sshll.u32 %s141, 4
          %s149 = int_to_ptr.vmem [resolvable:$true] %s148
          %154 = dma.hbm_to_vmem [thread:$0]  %s147, 2048, %s149, %s138, 128, 128, 8
        $region28: #{tpu_custom_call.1} parent=23 // pred_fallthru
          _
      $region24: #{tpu_custom_call.1} parent=5 // pred_fallthru
        _
      %p155 = scmp.le.s32.totalorder 1, %s15
      %p156 = scmp.lt.s32.totalorder %s15, 3
      %p157 = pnand %p155, %p156
      %p158 = pneg %p157
      // Predicated region
      $region29: #{tpu_custom_call.1} parent=5 // pred_check
        _
      $region30: #{tpu_custom_call.1} parent=5 // pred_check_branch
        %160 = sbr.rel (%p157) target = $region32
      $region31: #{tpu_custom_call.1} parent=5 // pred_region
        %s161 = ssub.s32 %s15, 1
        %s162 = sand.u32 %s28, 1
        %s163 = scalar_lea.sflag [#allocation3], %s162
        %s164 = sand.u32 %s28, 1
        %s165 = smul.addr %s164, 128
        %s166 = scalar_lea.vmem [#allocation2], %s165
        // Predicated region
        $region33: #{tpu_custom_call.1} parent=31 // pred_check
          %p167 = pneg %p41
        $region34: #{tpu_custom_call.1} parent=31 // pred_check_branch
          %169 = sbr.rel (%p167) target = $region36
        $region35: #{tpu_custom_call.1} parent=31 // pred_region
          %170 = dma.done %s163, 2048
        $region36: #{tpu_custom_call.1} parent=31 // pred_fallthru
          _
        %s171 = sand.u32 %s28, 1
        %s172 = scalar_lea.sflag [#allocation3], %s171
        %s173 = sand.u32 %s28, 1
        %s174 = smul.addr %s173, 128
        %s175 = scalar_lea.vmem [#allocation2], %s174
        %p176 = pneg %p41
        %p177 = pneg %p38
        %p178 = pneg %p62
        %p179 = pneg %p59
        %p180 = pneg %p83
        %p181 = pneg %p80
        %p182 = pneg %p109
        %p183 = pneg %p106
        %s184 = sand.u32 %s96, 1
        %s185 = scalar_lea.sflag [#allocation4], %s184
        %s186 = sand.u32 %s96, 1
        %s187 = smul.addr %s186, 16
        %s188 = scalar_lea.vmem [#allocation5], %s187
        %s189 = smul.u32 16, %s20
        %v190 = vld [vmem:[%s166] sm:$0xff]
        %v191 = vld [vmem:[%s166 + $0x8] sm:$0xff]
        %v192 = vld [vmem:[%s166 + $0x10] sm:$0xff]
        %v193 = vld [vmem:[%s166 + $0x18] sm:$0xff]
        %v194 = vld [vmem:[%s166 + $0x20] sm:$0xff]
        %v195 = vld [vmem:[%s166 + $0x28] sm:$0xff]
        %v196 = vld [vmem:[%s166 + $0x30] sm:$0xff]
        %v197 = vld [vmem:[%s166 + $0x38] sm:$0xff]
        %v198 = vld [vmem:[%s166 + $0x40] sm:$0xff]
        %v199 = vld [vmem:[%s166 + $0x48] sm:$0xff]
        %v200 = vld [vmem:[%s166 + $0x50] sm:$0xff]
        %v201 = vld [vmem:[%s166 + $0x58] sm:$0xff]
        %v202 = vld [vmem:[%s166 + $0x60] sm:$0xff]
        %v203 = vld [vmem:[%s166 + $0x68] sm:$0xff]
        %v204 = vld [vmem:[%s166 + $0x70] sm:$0xff]
        %v205 = vld [vmem:[%s166 + $0x78] sm:$0xff]
        %v206 = vld [vmem:[%s1] sm:$0xff]
        %v207 = vld [vmem:[%s1 + $0x8] sm:$0xff]
        %v208 = vld [vmem:[%s1 + $0x10] sm:$0xff]
        %v209 = vld [vmem:[%s1 + $0x18] sm:$0xff]
        %v210 = vld [vmem:[%s1 + $0x20] sm:$0xff]
        %v211 = vld [vmem:[%s1 + $0x28] sm:$0xff]
        %v212 = vld [vmem:[%s1 + $0x30] sm:$0xff]
        %v213 = vld [vmem:[%s1 + $0x38] sm:$0xff]
        %v214 = vld [vmem:[%s1 + $0x40] sm:$0xff]
        %v215 = vld [vmem:[%s1 + $0x48] sm:$0xff]
        %v216 = vld [vmem:[%s1 + $0x50] sm:$0xff]
        %v217 = vld [vmem:[%s1 + $0x58] sm:$0xff]
        %v218 = vld [vmem:[%s1 + $0x60] sm:$0xff]
        %v219 = vld [vmem:[%s1 + $0x68] sm:$0xff]
        %v220 = vld [vmem:[%s1 + $0x70] sm:$0xff]
        %v221 = vld [vmem:[%s1 + $0x78] sm:$0xff]
        %v222 = vld [vmem:[%s1 + $0x80] sm:$0x1]
        %v223 = vlaneseq
        %v224 = vshrl.u32 %v223, 7
        %v225 = vsub.s32 0, %v224
        %v226 = vrot.slane %v222, %v225
        %227 = vmatprep.subr.mxu0 0.0
        %228 = vmatpush1.msra.mxu0 %v221
        %229 = vmatprep.subr.mxu0 0.0
        %230 = vmatpush1.msra.mxu0 %v220
        %231 = vmatprep.subr.mxu0 0.0
        %232 = vmatpush1.msra.mxu0 %v219
        %233 = vmatprep.subr.mxu0 0.0
        %234 = vmatpush1.msra.mxu0 %v218
        %235 = vmatprep.subr.mxu0 0.0
        %236 = vmatpush1.msra.mxu0 %v217
        %237 = vmatprep.subr.mxu0 0.0
        %238 = vmatpush1.msra.mxu0 %v216
        %239 = vmatprep.subr.mxu0 0.0
        %240 = vmatpush1.msra.mxu0 %v215
        %241 = vmatprep.subr.mxu0 0.0
        %242 = vmatpush1.msra.mxu0 %v214
        %243 = vmatprep.subr.mxu0 0.0
        %244 = vmatpush1.msra.mxu0 %v213
        %245 = vmatprep.subr.mxu0 0.0
        %246 = vmatpush1.msra.mxu0 %v212
        %247 = vmatprep.subr.mxu0 0.0
        %248 = vmatpush1.msra.mxu0 %v211
        %249 = vmatprep.subr.mxu0 0.0
        %250 = vmatpush1.msra.mxu0 %v210
        %251 = vmatprep.subr.mxu0 0.0
        %252 = vmatpush1.msra.mxu0 %v209
        %253 = vmatprep.subr.mxu0 0.0
        %254 = vmatpush1.msra.mxu0 %v208
        %255 = vmatprep.subr.mxu0 0.0
        %256 = vmatpush1.msra.mxu0 %v207
        %257 = vmatprep.subr.mxu0 0.0
        %258 = vmatpush1.msra.mxu0 %v206
        %259 = vmatprep.subr.mxu0 0.0
        %260 = vmatpush2.msra.mxu0 0.0
        %261 = vmatprep.subr.mxu0 0.0
        %262 = vmatpush2.msra.mxu0 0.0
        %263 = vmatprep.subr.mxu0 0.0
        %264 = vmatpush2.msra.mxu0 0.0
        %265 = vmatprep.subr.mxu0 0.0
        %266 = vmatpush2.msra.mxu0 0.0
        %267 = vmatprep.subr.mxu0 0.0
        %268 = vmatpush2.msra.mxu0 0.0
        %269 = vmatprep.subr.mxu0 0.0
        %270 = vmatpush2.msra.mxu0 0.0
        %271 = vmatprep.subr.mxu0 0.0
        %272 = vmatpush2.msra.mxu0 0.0
        %273 = vmatprep.subr.mxu0 0.0
        %274 = vmatpush2.msra.mxu0 0.0
        %275 = vmatprep.subr.mxu0 0.0
        %276 = vmatpush2.msra.mxu0 0.0
        %277 = vmatprep.subr.mxu0 0.0
        %278 = vmatpush2.msra.mxu0 0.0
        %279 = vmatprep.subr.mxu0 0.0
        %280 = vmatpush2.msra.mxu0 0.0
        %281 = vmatprep.subr.mxu0 0.0
        %282 = vmatpush2.msra.mxu0 0.0
        %283 = vmatprep.subr.mxu0 0.0
        %284 = vmatpush2.msra.mxu0 0.0
        %285 = vmatprep.subr.mxu0 0.0
        %286 = vmatpush2.msra.mxu0 0.0
        %287 = vmatprep.subr.mxu0 0.0
        %288 = vmatpush2.msra.mxu0 0.0
        %289 = vmatprep.subr.mxu0 0.0
        %290 = vmatpush2.msra.mxu0 0.0
        %291 = vmatprep.mubr.f32.mxu0 0.0
        %292 = vmatmul.mubr.f32.gmra.mxu0 %v190
        %v293 = vpop.f32.mrf.mxu0
        %v294 = vadd.f32 %v226, %v293
        %v295 = vpop.f32.mrf.mxu0
        %296 = vmatprep.mubr.f32.mxu0 0.0
        %297 = vmatmul.mubr.f32.gmra.mxu0 %v191
        %v298 = vpop.f32.mrf.mxu0
        %v299 = vadd.f32 %v226, %v298
        %v300 = vpop.f32.mrf.mxu0
        %301 = vmatprep.mubr.f32.mxu0 0.0
        %302 = vmatmul.mubr.f32.gmra.mxu0 %v192
        %v303 = vpop.f32.mrf.mxu0
        %v304 = vadd.f32 %v226, %v303
        %v305 = vpop.f32.mrf.mxu0
        %306 = vmatprep.mubr.f32.mxu0 0.0
        %307 = vmatmul.mubr.f32.gmra.mxu0 %v193
        %v308 = vpop.f32.mrf.mxu0
        %v309 = vadd.f32 %v226, %v308
        %v310 = vpop.f32.mrf.mxu0
        %311 = vmatprep.mubr.f32.mxu0 0.0
        %312 = vmatmul.mubr.f32.gmra.mxu0 %v194
        %v313 = vpop.f32.mrf.mxu0
        %v314 = vadd.f32 %v226, %v313
        %v315 = vpop.f32.mrf.mxu0
        %316 = vmatprep.mubr.f32.mxu0 0.0
        %317 = vmatmul.mubr.f32.gmra.mxu0 %v195
        %v318 = vpop.f32.mrf.mxu0
        %v319 = vadd.f32 %v226, %v318
        %v320 = vpop.f32.mrf.mxu0
        %321 = vmatprep.mubr.f32.mxu0 0.0
        %322 = vmatmul.mubr.f32.gmra.mxu0 %v196
        %v323 = vpop.f32.mrf.mxu0
        %v324 = vadd.f32 %v226, %v323
        %v325 = vpop.f32.mrf.mxu0
        %326 = vmatprep.mubr.f32.mxu0 0.0
        %327 = vmatmul.mubr.f32.gmra.mxu0 %v197
        %v328 = vpop.f32.mrf.mxu0
        %v329 = vadd.f32 %v226, %v328
        %v330 = vpop.f32.mrf.mxu0
        %331 = vmatprep.mubr.f32.mxu0 0.0
        %332 = vmatmul.mubr.f32.gmra.mxu0 %v198
        %v333 = vpop.f32.mrf.mxu0
        %v334 = vadd.f32 %v226, %v333
        %v335 = vpop.f32.mrf.mxu0
        %336 = vmatprep.mubr.f32.mxu0 0.0
        %337 = vmatmul.mubr.f32.gmra.mxu0 %v199
        %v338 = vpop.f32.mrf.mxu0
        %v339 = vadd.f32 %v226, %v338
        %v340 = vpop.f32.mrf.mxu0
        %341 = vmatprep.mubr.f32.mxu0 0.0
        %342 = vmatmul.mubr.f32.gmra.mxu0 %v200
        %v343 = vpop.f32.mrf.mxu0
        %v344 = vadd.f32 %v226, %v343
        %v345 = vpop.f32.mrf.mxu0
        %346 = vmatprep.mubr.f32.mxu0 0.0
        %347 = vmatmul.mubr.f32.gmra.mxu0 %v201
        %v348 = vpop.f32.mrf.mxu0
        %v349 = vadd.f32 %v226, %v348
        %v350 = vpop.f32.mrf.mxu0
        %351 = vmatprep.mubr.f32.mxu0 0.0
        %352 = vmatmul.mubr.f32.gmra.mxu0 %v202
        %v353 = vpop.f32.mrf.mxu0
        %v354 = vadd.f32 %v226, %v353
        %v355 = vpop.f32.mrf.mxu0
        %356 = vmatprep.mubr.f32.mxu0 0.0
        %357 = vmatmul.mubr.f32.gmra.mxu0 %v203
        %v358 = vpop.f32.mrf.mxu0
        %v359 = vadd.f32 %v226, %v358
        %v360 = vpop.f32.mrf.mxu0
        %361 = vmatprep.mubr.f32.mxu0 0.0
        %362 = vmatmul.mubr.f32.gmra.mxu0 %v204
        %v363 = vpop.f32.mrf.mxu0
        %v364 = vadd.f32 %v226, %v363
        %v365 = vpop.f32.mrf.mxu0
        %366 = vmatprep.mubr.f32.mxu0 0.0
        %367 = vmatmul.mubr.f32.gmra.mxu0 %v205
        %v368 = vpop.f32.mrf.mxu0
        %v369 = vadd.f32 %v226, %v368
        %v370 = vpop.f32.mrf.mxu0
        %371 = vdwg.mxu0
        %v372 = vtanh.pop %v294
        %v373 = vtanh.pop %v299
        %v374 = vtanh.pop %v304
        %v375 = vtanh.pop %v309
        %v376 = vtanh.pop %v314
        %v377 = vtanh.pop %v319
        %v378 = vtanh.pop %v324
        %v379 = vtanh.pop %v329
        %v380 = vtanh.pop %v334
        %v381 = vtanh.pop %v339
        %v382 = vtanh.pop %v344
        %v383 = vtanh.pop %v349
        %v384 = vtanh.pop %v354
        %v385 = vtanh.pop %v359
        %v386 = vtanh.pop %v364
        %v387 = vtanh.pop %v369
        %v388 = vld [vmem:[%s2] sm:$0xff]
        %v389 = vld [vmem:[%s2 + $0x8] sm:$0x1]
        %v390 = vlaneseq
        %v391 = vshrl.u32 %v390, 7
        %v392 = vsub.s32 0, %v391
        %v393 = vrot.slane %v389, %v392
        %vm394 = vcmask 64512
        %v396 = vsel %vm394, %v372, 0
        %v399 = vsel %vm394, %v373, 0
        %v402 = vsel %vm394, %v374, 0
        %v405 = vsel %vm394, %v375, 0
        %v408 = vsel %vm394, %v376, 0
        %v411 = vsel %vm394, %v377, 0
        %v414 = vsel %vm394, %v378, 0
        %v417 = vsel %vm394, %v379, 0
        %v420 = vsel %vm394, %v380, 0
        %v423 = vsel %vm394, %v381, 0
        %v426 = vsel %vm394, %v382, 0
        %v429 = vsel %vm394, %v383, 0
        %v432 = vsel %vm394, %v384, 0
        %v435 = vsel %vm394, %v385, 0
        %v438 = vsel %vm394, %v386, 0
        %v441 = vsel %vm394, %v387, 0
        %443 = vmatprep.subr.mxu0 0.0
        %444 = vmatpush1.msra.mxu0 0.0
        %445 = vmatprep.subr.mxu0 0.0
        %446 = vmatpush1.msra.mxu0 0.0
        %447 = vmatprep.subr.mxu0 0.0
        %448 = vmatpush1.msra.mxu0 0.0
        %449 = vmatprep.subr.mxu0 0.0
        %450 = vmatpush1.msra.mxu0 0.0
        %451 = vmatprep.subr.mxu0 0.0
        %452 = vmatpush1.msra.mxu0 0.0
        %453 = vmatprep.subr.mxu0 0.0
        %454 = vmatpush1.msra.mxu0 0.0
        %455 = vmatprep.subr.mxu0 0.0
        %456 = vmatpush1.msra.mxu0 0.0
        %457 = vmatprep.subr.mxu0 0.0
        %458 = vmatpush1.msra.mxu0 0.0
        %459 = vmatprep.subr.mxu0 0.0
        %460 = vmatpush1.msra.mxu0 0.0
        %461 = vmatprep.subr.mxu0 0.0
        %462 = vmatpush1.msra.mxu0 0.0
        %463 = vmatprep.subr.mxu0 0.0
        %464 = vmatpush1.msra.mxu0 0.0
        %465 = vmatprep.subr.mxu0 0.0
        %466 = vmatpush1.msra.mxu0 0.0
        %467 = vmatprep.subr.mxu0 0.0
        %468 = vmatpush1.msra.mxu0 0.0
        %469 = vmatprep.subr.mxu0 0.0
        %470 = vmatpush1.msra.mxu0 0.0
        %471 = vmatprep.subr.mxu0 0.0
        %472 = vmatpush1.msra.mxu0 0.0
        %473 = vmatprep.subr.mxu0 0.0
        %474 = vmatpush1.msra.mxu0 %v388
        %475 = vmatprep.subr.mxu0 0.0
        %476 = vmatpush2.msra.mxu0 0.0
        %477 = vmatprep.subr.mxu0 0.0
        %478 = vmatpush2.msra.mxu0 0.0
        %479 = vmatprep.subr.mxu0 0.0
        %480 = vmatpush2.msra.mxu0 0.0
        %481 = vmatprep.subr.mxu0 0.0
        %482 = vmatpush2.msra.mxu0 0.0
        %483 = vmatprep.subr.mxu0 0.0
        %484 = vmatpush2.msra.mxu0 0.0
        %485 = vmatprep.subr.mxu0 0.0
        %486 = vmatpush2.msra.mxu0 0.0
        %487 = vmatprep.subr.mxu0 0.0
        %488 = vmatpush2.msra.mxu0 0.0
        %489 = vmatprep.subr.mxu0 0.0
        %490 = vmatpush2.msra.mxu0 0.0
        %491 = vmatprep.subr.mxu0 0.0
        %492 = vmatpush2.msra.mxu0 0.0
        %493 = vmatprep.subr.mxu0 0.0
        %494 = vmatpush2.msra.mxu0 0.0
        %495 = vmatprep.subr.mxu0 0.0
        %496 = vmatpush2.msra.mxu0 0.0
        %497 = vmatprep.subr.mxu0 0.0
        %498 = vmatpush2.msra.mxu0 0.0
        %499 = vmatprep.subr.mxu0 0.0
        %500 = vmatpush2.msra.mxu0 0.0
        %501 = vmatprep.subr.mxu0 0.0
        %502 = vmatpush2.msra.mxu0 0.0
        %503 = vmatprep.subr.mxu0 0.0
        %504 = vmatpush2.msra.mxu0 0.0
        %505 = vmatprep.subr.mxu0 0.0
        %506 = vmatpush2.msra.mxu0 0.0
        %507 = vmatprep.mubr.f32.mxu0 0.0
        %508 = vmatmul.mubr.f32.gmra.mxu0 %v396
        %v509 = vpop.f32.mrf.mxu0
        %v510 = vadd.f32 %v393, %v509
        %v511 = vpop.f32.mrf.mxu0
        %512 = vmatprep.mubr.f32.mxu0 0.0
        %513 = vmatmul.mubr.f32.gmra.mxu0 %v399
        %v514 = vpop.f32.mrf.mxu0
        %v515 = vadd.f32 %v393, %v514
        %v516 = vpop.f32.mrf.mxu0
        %517 = vmatprep.mubr.f32.mxu0 0.0
        %518 = vmatmul.mubr.f32.gmra.mxu0 %v402
        %v519 = vpop.f32.mrf.mxu0
        %v520 = vadd.f32 %v393, %v519
        %v521 = vpop.f32.mrf.mxu0
        %522 = vmatprep.mubr.f32.mxu0 0.0
        %523 = vmatmul.mubr.f32.gmra.mxu0 %v405
        %v524 = vpop.f32.mrf.mxu0
        %v525 = vadd.f32 %v393, %v524
        %v526 = vpop.f32.mrf.mxu0
        %527 = vmatprep.mubr.f32.mxu0 0.0
        %528 = vmatmul.mubr.f32.gmra.mxu0 %v408
        %v529 = vpop.f32.mrf.mxu0
        %v530 = vadd.f32 %v393, %v529
        %v531 = vpop.f32.mrf.mxu0
        %532 = vmatprep.mubr.f32.mxu0 0.0
        %533 = vmatmul.mubr.f32.gmra.mxu0 %v411
        %v534 = vpop.f32.mrf.mxu0
        %v535 = vadd.f32 %v393, %v534
        %v536 = vpop.f32.mrf.mxu0
        %537 = vmatprep.mubr.f32.mxu0 0.0
        %538 = vmatmul.mubr.f32.gmra.mxu0 %v414
        %v539 = vpop.f32.mrf.mxu0
        %v540 = vadd.f32 %v393, %v539
        %v541 = vpop.f32.mrf.mxu0
        %542 = vmatprep.mubr.f32.mxu0 0.0
        %543 = vmatmul.mubr.f32.gmra.mxu0 %v417
        %v544 = vpop.f32.mrf.mxu0
        %v545 = vadd.f32 %v393, %v544
        %v546 = vpop.f32.mrf.mxu0
        %547 = vmatprep.mubr.f32.mxu0 0.0
        %548 = vmatmul.mubr.f32.gmra.mxu0 %v420
        %v549 = vpop.f32.mrf.mxu0
        %v550 = vadd.f32 %v393, %v549
        %v551 = vpop.f32.mrf.mxu0
        %552 = vmatprep.mubr.f32.mxu0 0.0
        %553 = vmatmul.mubr.f32.gmra.mxu0 %v423
        %v554 = vpop.f32.mrf.mxu0
        %v555 = vadd.f32 %v393, %v554
        %v556 = vpop.f32.mrf.mxu0
        %557 = vmatprep.mubr.f32.mxu0 0.0
        %558 = vmatmul.mubr.f32.gmra.mxu0 %v426
        %v559 = vpop.f32.mrf.mxu0
        %v560 = vadd.f32 %v393, %v559
        %v561 = vpop.f32.mrf.mxu0
        %562 = vmatprep.mubr.f32.mxu0 0.0
        %563 = vmatmul.mubr.f32.gmra.mxu0 %v429
        %v564 = vpop.f32.mrf.mxu0
        %v565 = vadd.f32 %v393, %v564
        %v566 = vpop.f32.mrf.mxu0
        %567 = vmatprep.mubr.f32.mxu0 0.0
        %568 = vmatmul.mubr.f32.gmra.mxu0 %v432
        %v569 = vpop.f32.mrf.mxu0
        %v570 = vadd.f32 %v393, %v569
        %v571 = vpop.f32.mrf.mxu0
        %572 = vmatprep.mubr.f32.mxu0 0.0
        %573 = vmatmul.mubr.f32.gmra.mxu0 %v435
        %v574 = vpop.f32.mrf.mxu0
        %v575 = vadd.f32 %v393, %v574
        %v576 = vpop.f32.mrf.mxu0
        %577 = vmatprep.mubr.f32.mxu0 0.0
        %578 = vmatmul.mubr.f32.gmra.mxu0 %v438
        %v579 = vpop.f32.mrf.mxu0
        %v580 = vadd.f32 %v393, %v579
        %v581 = vpop.f32.mrf.mxu0
        %582 = vmatprep.mubr.f32.mxu0 0.0
        %583 = vmatmul.mubr.f32.gmra.mxu0 %v441
        %v584 = vpop.f32.mrf.mxu0
        %v585 = vadd.f32 %v393, %v584
        %v586 = vpop.f32.mrf.mxu0
        %587 = vdwg.mxu0
        %588 = vxpose.xlu0.b32.start [1/16] %v510, 128
        %589 = vxpose.xlu0.b32.cont [2/16] %v515, 128
        %590 = vxpose.xlu0.b32.cont [3/16] %v520, 128
        %591 = vxpose.xlu0.b32.cont [4/16] %v525, 128
        %592 = vxpose.xlu0.b32.cont [5/16] %v530, 128
        %593 = vxpose.xlu0.b32.cont [6/16] %v535, 128
        %594 = vxpose.xlu0.b32.cont [7/16] %v540, 128
        %595 = vxpose.xlu0.b32.cont [8/16] %v545, 128
        %596 = vxpose.xlu0.b32.cont [9/16] %v550, 128
        %597 = vxpose.xlu0.b32.cont [10/16] %v555, 128
        %598 = vxpose.xlu0.b32.cont [11/16] %v560, 128
        %599 = vxpose.xlu0.b32.cont [12/16] %v565, 128
        %600 = vxpose.xlu0.b32.cont [13/16] %v570, 128
        %601 = vxpose.xlu0.b32.cont [14/16] %v575, 128
        %602 = vxpose.xlu0.b32.cont [15/16] %v580, 128
        %603 = vxpose.xlu0.b32.end [16/16] %v585, 128
        %v604 = vpop.trf.xlu0
        %v605 = vpop.trf.xlu0
        %v606 = vpop.trf.xlu0
        %v607 = vpop.trf.xlu0
        %v608 = vpop.trf.xlu0
        %v609 = vpop.trf.xlu0
        %v610 = vpop.trf.xlu0
        %v611 = vpop.trf.xlu0
        %v612 = vpop.trf.xlu0
        %v613 = vpop.trf.xlu0
        %v614 = vpop.trf.xlu0
        %v615 = vpop.trf.xlu0
        %v616 = vpop.trf.xlu0
        %v617 = vpop.trf.xlu0
        %v618 = vpop.trf.xlu0
        %v619 = vpop.trf.xlu0
        %620 = vst [vmem:[%s188] sm:$0xff] %v604
        %621 = vst [vmem:[%s188 + $0x8] sm:$0xff] %v605
        %s622 = sand.u32 %s96, 1
        %s623 = scalar_lea.sflag [#allocation4], %s622
        %s624 = sand.u32 %s96, 1
        %s625 = smul.addr %s624, 16
        %s626 = scalar_lea.vmem [#allocation5], %s625
        // Predicated region
        $region37: #{tpu_custom_call.1} parent=31 // pred_check
          %p627 = pneg %p106
        $region38: #{tpu_custom_call.1} parent=31 // pred_check_branch
          %629 = sbr.rel (%p627) target = $region40
        $region39: #{tpu_custom_call.1} parent=31 // pred_region
          %s631 = ssub.s32 256, 256
          %632 = vsyncadd %s623, %s631
          %s633 = smul.addr %s20, 128
          %s634 = scalar_lea.hbm %s3, %s633
          %s635 = sshll.u32 %s626, 4
          %s636 = int_to_ptr.vmem [resolvable:$true] %s635
          %641 = dma.vmem_to_hbm [thread:$0]  %s636, 256, %s634, %s623, 128, 256, 8
        $region40: #{tpu_custom_call.1} parent=31 // pred_fallthru
          _
      $region32: #{tpu_custom_call.1} parent=5 // pred_fallthru
        _
      %p642 = scmp.le.s32.totalorder 2, %s15
      // Predicated region
      $region41: #{tpu_custom_call.1} parent=5 // pred_check
        %p643 = pneg %p642
      $region42: #{tpu_custom_call.1} parent=5 // pred_check_branch
        %645 = sbr.rel (%p643) target = $region44
      $region43: #{tpu_custom_call.1} parent=5 // pred_region
        %s646 = ssub.s32 %s15, 2
        // Predicated region
        $region45: #{tpu_custom_call.1} parent=43 // pred_check
          %p647 = pneg %p112
        $region46: #{tpu_custom_call.1} parent=43 // pred_check_branch
          %649 = sbr.rel (%p647) target = $region48
        $region47: #{tpu_custom_call.1} parent=43 // pred_region
          %s650 = sand.u32 %s97, 1
          %s651 = scalar_lea.sflag [#allocation4], %s650
          %s652 = sand.u32 %s97, 1
          %s653 = smul.addr %s652, 16
          %s654 = scalar_lea.vmem [#allocation5], %s653
          %655 = dma.done %s651, 256
        $region48: #{tpu_custom_call.1} parent=43 // pred_fallthru
          _
      $region44: #{tpu_custom_call.1} parent=5 // pred_fallthru
        _
    $region6: #{tpu_custom_call.1} parent=1 // loop_footer
      %s19 = sadd.s32 1, %s15
    $region7: #{tpu_custom_call.1} parent=1 // loop_footer_branch
      %14 = sbr.rel target = $region3
    $region8: #{tpu_custom_call.1} parent=1 // loop_exit
      _
    %656 = vsyncpa [#allocation3], 1
    %s657 = scalar_lea.sflag [#allocation3], 1
    %658 = vsyncpa %s657, 1
    %659 = vsyncpa [#allocation4], 1
    %s660 = scalar_lea.sflag [#allocation4], 1
    %661 = vsyncpa %s660, 1

</llo_original>
